<compile_context>
chip_gen: v6e
topology: v6e:2x2x1
jax: 0.10.0
libtpu: 0.0.40
codegen_flags: <defaults>
</compile_context>

<pallas_src>
import jax
import jax.numpy as jnp
from jax.experimental import pallas as pl
from jax.experimental.pallas import tpu as pltpu


def _round_up(x, m):
    return ((x + m - 1) // m) * m


def course_encoder_kernel(x_ref, m_ref, e_ref, w1_ref, b1_ref, w2_ref, b2_ref,
                          o_ref):
    # x_ref : (TN, C*F_pad)      m_ref : (TN, C)
    # e_ref : (C, C*H) 0/1 mask-expansion matrix
    # w1    : (C*F_pad, C*H) block-diag   b1 : (1, C*H)
    # w2    : (C*H, H) vertically-tiled   b2 : (1, H)
    # o_ref : (TN, H)
    x = x_ref[...]
    m = m_ref[...]

    # GEMM1: all C per-course Linears at once via the block-diagonal weight.
    h = jnp.dot(x, w1_ref[...], preferred_element_type=jnp.float32)  # (TN, C*H)
    h = jnp.maximum(h + b1_ref[...], 0.0)                            # bias + ReLU

    # TODO(synk): Dropout(0.1) is identity in eval/inference mode; training-mode
    # stochastic masking is not applied here.

    # Expand per-course mask (TN, C) -> (TN, C*H) on the MXU (0/1 matrix, exact).
    m_exp = jnp.dot(m, e_ref[...], preferred_element_type=jnp.float32)
    counts = jnp.sum(m, axis=1, keepdims=True)                       # (TN, 1)

    # GEMM2 (K = C*H, lane-dense): the masked sum over courses commutes with
    # the second Linear, so this is exactly sum_c m_c * (h_c @ w2 + b2).
    s = jnp.dot(h * m_exp, w2_ref[...], preferred_element_type=jnp.float32)
    s = s + counts * b2_ref[...]

    o_ref[...] = s / (counts + 1e-8)


def course_encoder_forward(course_features, course_masks, params, *,
                           row_tile=1024):
    B, S, C, F = course_features.shape
    H = params["w1"].shape[1]
    N = B * S
    F_pad = _round_up(F, 8)

    # ---- lane-dense input prep -------------------------------------------
    x = course_features.reshape(N, C, F).astype(jnp.float32)
    x = jnp.pad(x, ((0, 0), (0, 0), (0, F_pad - F))).reshape(N, C * F_pad)
    m = course_masks.reshape(N, C).astype(jnp.float32)

    # ---- MXU-friendly weight prep ----------------------------------------
    w1_pad = jnp.pad(params["w1"].astype(jnp.float32), ((0, F_pad - F), (0, 0)))
    w1_bd = jnp.kron(jnp.eye(C, dtype=jnp.float32), w1_pad)          # (C*F_pad, C*H)
    b1_t = jnp.tile(params["b1"].astype(jnp.float32).reshape(1, H), (1, C))  # (1, C*H)
    w2_t = jnp.tile(params["w2"].astype(jnp.float32), (C, 1))        # (C*H, H)
    b2 = params["b2"].astype(jnp.float32).reshape(1, H)
    expand = jnp.kron(jnp.eye(C, dtype=jnp.float32),
                      jnp.ones((1, H), jnp.float32))                 # (C, C*H)

    # ---- row tiling --------------------------------------------------------
    # Big tile to amortize the ~0.35 us per-grid-step overhead; keep a few grid
    # steps on large problems so v7x's 2 TensorCores share the "parallel" axis.
    TN = min(row_tile, _round_up(N, 8))
    while TN > 512 and pl.cdiv(N, TN) < 4:
        TN //= 2
    N_pad = _round_up(N, TN)
    if N_pad != N:
        # Zero-mask padded rows produce 0 and are sliced off below.
        x = jnp.pad(x, ((0, N_pad - N), (0, 0)))
        m = jnp.pad(m, ((0, N_pad - N), (0, 0)))

    grid = (N_pad // TN,)

    CF, CH = C * F_pad, C * H
    flops = 2 * N_pad * (CF * CH + C * CH + CH * H)
    bytes_accessed = (
        N_pad * CF * 4                        # x
        + N_pad * C * 4                       # masks
        + N_pad * H * 4                       # output
        + (CF * CH + CH + C * CH + CH * H + H) * 4  # weights / expansion
    )

    out = pl.pallas_call(
        course_encoder_kernel,
        out_shape=jax.ShapeDtypeStruct((N_pad, H), jnp.float32),
        grid=grid,
        in_specs=[
            pl.BlockSpec((TN, CF), lambda i: (i, 0)),
            pl.BlockSpec((TN, C), lambda i: (i, 0)),
            pl.BlockSpec((C, CH), lambda i: (0, 0)),     # mask expansion matrix
            pl.BlockSpec((CF, CH), lambda i: (0, 0)),    # block-diag W1
            pl.BlockSpec((1, CH), lambda i: (0, 0)),
            pl.BlockSpec((CH, H), lambda i: (0, 0)),     # tiled W2
            pl.BlockSpec((1, H), lambda i: (0, 0)),
        ],
        out_specs=pl.BlockSpec((TN, H), lambda i: (i, 0)),
        compiler_params=pltpu.CompilerParams(
            dimension_semantics=("parallel",),
        ),
        cost_estimate=pl.CostEstimate(
            flops=flops, transcendentals=0, bytes_accessed=bytes_accessed
        ),
    )(x, m, expand, w1_bd, b1_t, w2_t, b2)

    return out[:N].reshape(B, S, H)


def init_params(key, feat_dim=7, hidden_dim=64):
    # Deterministic init mirroring nn.Linear default (uniform +/- 1/sqrt(fan_in)).
    k1, k2, k3, k4 = jax.random.split(key, 4)
    lim1 = 1.0 / jnp.sqrt(feat_dim)
    lim2 = 1.0 / jnp.sqrt(hidden_dim)
    return {
        "w1": jax.random.uniform(k1, (feat_dim, hidden_dim), jnp.float32, -lim1, lim1),
        "b1": jax.random.uniform(k2, (1, hidden_dim), jnp.float32, -lim1, lim1),
        "w2": jax.random.uniform(k3, (hidden_dim, hidden_dim), jnp.float32, -lim2, lim2),
        "b2": jax.random.uniform(k4, (1, hidden_dim), jnp.float32, -lim2, lim2),
    }


def reference_forward(course_features, course_masks, params):
    # Pure-JAX reference of the PyTorch forward (eval mode).
    B, S, C, F = course_features.shape
    flat = course_features.reshape(-1, F)
    h = jnp.maximum(flat @ params["w1"] + params["b1"], 0.0)
    e = h @ params["w2"] + params["b2"]
    e = e.reshape(B, S, C, -1)
    masked = e * course_masks[..., None]
    sem_sum = masked.sum(axis=2)
    counts = course_masks.sum(axis=2, keepdims=True)
    return sem_sum / (counts + 1e-8)


if __name__ == "__main__":
    F, H = 7, 64
    key = jax.random.PRNGKey(0)
    k_feat, k_mask, k_param = jax.random.split(key, 3)
    params = init_params(k_param, feat_dim=F, hidden_dim=H)

    # Case 1: small, single grid step.
    B, S, C = 2, 4, 8
    feats = jax.random.normal(k_feat, (B, S, C, F), jnp.float32)
    masks = (jax.random.uniform(k_mask, (B, S, C)) > 0.3).astype(jnp.float32)
    out = jax.block_until_ready(course_encoder_forward(feats, masks, params))
    ref = reference_forward(feats, masks, params)
    assert out.shape == (B, S, H)
    assert jnp.allclose(out, ref, atol=1e-5, rtol=1e-5), "mismatch vs reference (case 1)"

    # Case 2: ragged B*S exercising the zero-mask row-padding path.
    B2, S2 = 3, 5
    feats2 = jax.random.normal(k_feat, (B2, S2, C, F), jnp.float32)
    masks2 = (jax.random.uniform(k_mask, (B2, S2, C)) > 0.3).astype(jnp.float32)
    out2 = jax.block_until_ready(course_encoder_forward(feats2, masks2, params))
    ref2 = reference_forward(feats2, masks2, params)
    assert out2.shape == (B2, S2, H)
    assert jnp.allclose(out2, ref2, atol=1e-5, rtol=1e-5), "mismatch vs reference (case 2)"

    # Case 3: multi-step grid + row padding (small row_tile forces grid > 1).
    B3, S3 = 8, 40
    feats3 = jax.random.normal(k_feat, (B3, S3, C, F), jnp.float32)
    masks3 = (jax.random.uniform(k_mask, (B3, S3, C)) > 0.3).astype(jnp.float32)
    out3 = jax.block_until_ready(
        course_encoder_forward(feats3, masks3, params, row_tile=128))
    ref3 = reference_forward(feats3, masks3, params)
    assert out3.shape == (B3, S3, H)
    assert jnp.allclose(out3, ref3, atol=1e-5, rtol=1e-5), "mismatch vs reference (case 3)"

    print("KERNEL_OK")
</pallas_src>

<mosaic_0001>
module attributes {stable_mosaic.version = 11 : i64} {
  func.func @course_encoder_kernel(%arg0: i32, %arg1: memref<8x64xf32, #tpu.memory_space<vmem>>, %arg2: memref<8x8xf32, #tpu.memory_space<vmem>>, %arg3: memref<8x512xf32, #tpu.memory_space<vmem>>, %arg4: memref<64x512xf32, #tpu.memory_space<vmem>>, %arg5: memref<1x512xf32, #tpu.memory_space<vmem>>, %arg6: memref<512x64xf32, #tpu.memory_space<vmem>>, %arg7: memref<1x64xf32, #tpu.memory_space<vmem>>, %arg8: memref<8x64xf32, #tpu.memory_space<vmem>>) attributes {dimension_semantics = [#tpu.dimension_semantics<parallel>], iteration_bounds = array<i64: 1>, scalar_prefetch = 0 : i64, scratch_operands = 0 : i64, tpu.core_type = #tpu.core_type<tc>, window_params = [{transform_indices = @transform_0, window_bounds = array<i64: 8, 64>}, {transform_indices = @transform_1, window_bounds = array<i64: 8, 8>}, {pipeline_mode = #tpu.pipeline_mode<synchronous>, transform_indices = @transform_2, window_bounds = array<i64: 8, 512>}, {pipeline_mode = #tpu.pipeline_mode<synchronous>, transform_indices = @transform_3, window_bounds = array<i64: 64, 512>}, {pipeline_mode = #tpu.pipeline_mode<synchronous>, transform_indices = @transform_4, window_bounds = array<i64: 1, 512>}, {pipeline_mode = #tpu.pipeline_mode<synchronous>, transform_indices = @transform_5, window_bounds = array<i64: 512, 64>}, {pipeline_mode = #tpu.pipeline_mode<synchronous>, transform_indices = @transform_6, window_bounds = array<i64: 1, 64>}, {transform_indices = @transform_7, window_bounds = array<i64: 8, 64>}]} {
    %c0 = arith.constant 0 : index
    %c0_0 = arith.constant 0 : index
    %0 = vector.load %arg1[%c0, %c0_0] : memref<8x64xf32, #tpu.memory_space<vmem>>, vector<8x64xf32>
    %c0_1 = arith.constant 0 : index
    %c0_2 = arith.constant 0 : index
    %1 = vector.load %arg2[%c0_1, %c0_2] : memref<8x8xf32, #tpu.memory_space<vmem>>, vector<8x8xf32>
    %c0_3 = arith.constant 0 : index
    %c0_4 = arith.constant 0 : index
    %2 = vector.load %arg4[%c0_3, %c0_4] : memref<64x512xf32, #tpu.memory_space<vmem>>, vector<64x512xf32>
    %cst = arith.constant dense<0.000000e+00> : vector<8x512xf32>
    %3 = tpu.matmul %0, %2, %cst {dimension_numbers = #tpu.dot_dimension_numbers<[1], [0], [0], [1], [0, 0, 1, 1], [], []>} : vector<8x64xf32>, vector<64x512xf32>, vector<8x512xf32> -> vector<8x512xf32>
    %c0_5 = arith.constant 0 : index
    %c0_6 = arith.constant 0 : index
    %4 = vector.load %arg5[%c0_5, %c0_6] : memref<1x512xf32, #tpu.memory_space<vmem>>, vector<1x512xf32>
    %5 = vector.broadcast %4 : vector<1x512xf32> to vector<8x512xf32>
    %6 = arith.addf %3, %5 : vector<8x512xf32>
    %cst_7 = arith.constant 0.000000e+00 : f32
    %7 = vector.broadcast %cst_7 : f32 to vector<8x512xf32>
    %8 = arith.maximumf %6, %7 : vector<8x512xf32>
    %c0_8 = arith.constant 0 : index
    %c0_9 = arith.constant 0 : index
    %9 = vector.load %arg3[%c0_8, %c0_9] : memref<8x512xf32, #tpu.memory_space<vmem>>, vector<8x512xf32>
    %cst_10 = arith.constant dense<0.000000e+00> : vector<8x512xf32>
    %10 = tpu.matmul %1, %9, %cst_10 {dimension_numbers = #tpu.dot_dimension_numbers<[1], [0], [0], [1], [0, 0, 1, 1], [], []>} : vector<8x8xf32>, vector<8x512xf32>, vector<8x512xf32> -> vector<8x512xf32>
    %cst_11 = arith.constant dense<0.000000e+00> : vector<8xf32>
    %11 = vector.multi_reduction <add>, %1, %cst_11 [1] : vector<8x8xf32> to vector<8xf32>
    %12 = vector.shape_cast %11 : vector<8xf32> to vector<8x1xf32>
    %13 = arith.mulf %8, %10 : vector<8x512xf32>
    %c0_12 = arith.constant 0 : index
    %c0_13 = arith.constant 0 : index
    %14 = vector.load %arg6[%c0_12, %c0_13] : memref<512x64xf32, #tpu.memory_space<vmem>>, vector<512x64xf32>
    %cst_14 = arith.constant dense<0.000000e+00> : vector<8x64xf32>
    %15 = tpu.matmul %13, %14, %cst_14 {dimension_numbers = #tpu.dot_dimension_numbers<[1], [0], [0], [1], [0, 0, 1, 1], [], []>} : vector<8x512xf32>, vector<512x64xf32>, vector<8x64xf32> -> vector<8x64xf32>
    %c0_15 = arith.constant 0 : index
    %c0_16 = arith.constant 0 : index
    %16 = vector.load %arg7[%c0_15, %c0_16] : memref<1x64xf32, #tpu.memory_space<vmem>>, vector<1x64xf32>
    %17 = vector.broadcast %12 : vector<8x1xf32> to vector<8x64xf32>
    %18 = vector.broadcast %16 : vector<1x64xf32> to vector<8x64xf32>
    %19 = arith.mulf %17, %18 : vector<8x64xf32>
    %20 = arith.addf %15, %19 : vector<8x64xf32>
    %cst_17 = arith.constant 9.99999993E-9 : f32
    %21 = vector.broadcast %cst_17 : f32 to vector<8x1xf32>
    %22 = arith.addf %12, %21 : vector<8x1xf32>
    %23 = vector.broadcast %22 : vector<8x1xf32> to vector<8x64xf32>
    %24 = arith.divf %20, %23 : vector<8x64xf32>
    %c0_18 = arith.constant 0 : index
    %c0_19 = arith.constant 0 : index
    %25 = vector.load %arg8[%c0_18, %c0_19] : memref<8x64xf32, #tpu.memory_space<vmem>>, vector<8x64xf32>
    tpu.vector_store %arg8[%c0_18, %c0_19], %24 {strides = array<i32>} : memref<8x64xf32, #tpu.memory_space<vmem>>, vector<8x64xf32>,
    return
  }
  func.func @transform_0(%arg0: i32) -> (i32, i32) {
    %c0_i32 = arith.constant 0 : i32
    %c0_i32_0 = arith.constant 0 : i32
    return %arg0, %c0_i32 : i32, i32
  }
  func.func @transform_1(%arg0: i32) -> (i32, i32) {
    %c0_i32 = arith.constant 0 : i32
    %c0_i32_0 = arith.constant 0 : i32
    return %arg0, %c0_i32 : i32, i32
  }
  func.func @transform_2(%arg0: i32) -> (i32, i32) {
    %c0_i32 = arith.constant 0 : i32
    %c0_i32_0 = arith.constant 0 : i32
    %c0_i32_1 = arith.constant 0 : i32
    return %c0_i32, %c0_i32_0 : i32, i32
  }
  func.func @transform_3(%arg0: i32) -> (i32, i32) {
    %c0_i32 = arith.constant 0 : i32
    %c0_i32_0 = arith.constant 0 : i32
    %c0_i32_1 = arith.constant 0 : i32
    return %c0_i32, %c0_i32_0 : i32, i32
  }
  func.func @transform_4(%arg0: i32) -> (i32, i32) {
    %c0_i32 = arith.constant 0 : i32
    %c0_i32_0 = arith.constant 0 : i32
    %c0_i32_1 = arith.constant 0 : i32
    return %c0_i32, %c0_i32_0 : i32, i32
  }
  func.func @transform_5(%arg0: i32) -> (i32, i32) {
    %c0_i32 = arith.constant 0 : i32
    %c0_i32_0 = arith.constant 0 : i32
    %c0_i32_1 = arith.constant 0 : i32
    return %c0_i32, %c0_i32_0 : i32, i32
  }
  func.func @transform_6(%arg0: i32) -> (i32, i32) {
    %c0_i32 = arith.constant 0 : i32
    %c0_i32_0 = arith.constant 0 : i32
    %c0_i32_1 = arith.constant 0 : i32
    return %c0_i32, %c0_i32_0 : i32, i32
  }
  func.func @transform_7(%arg0: i32) -> (i32, i32) {
    %c0_i32 = arith.constant 0 : i32
    %c0_i32_0 = arith.constant 0 : i32
    return %arg0, %c0_i32 : i32, i32
  }
}

</mosaic_0001>

<llo_original>
// kernel: tpu_custom_call.1
$region0: #{tpu_custom_call.1}
  #allocation0 [shape = 'u32[]', space=smem, size = 0x4, offset = 0x4, fixed_abs, tag = 'smem constant byte address 0x4 - core index']
  #allocation1 [shape = 'u32[144,128]{1,0:T(1,128)}', space=vmem, size = 0x12000, scoped, tag = 'internal scratch']
  %s0 = inlined_call_operand.vmem [shape: f32[8,64], index: 0, kind: input, shape index: {}]
  %s1 = inlined_call_operand.vmem [shape: f32[8,8], index: 1, kind: input, shape index: {}]
  %s2 = inlined_call_operand.vmem [shape: f32[8,512], index: 2, kind: input, shape index: {}]
  %s3 = inlined_call_operand.vmem [shape: f32[64,512], index: 3, kind: input, shape index: {}]
  %s4 = inlined_call_operand.vmem [shape: f32[1,512], index: 4, kind: input, shape index: {}]
  %s5 = inlined_call_operand.vmem [shape: f32[512,64], index: 5, kind: input, shape index: {}]
  %s6 = inlined_call_operand.vmem [shape: f32[1,64], index: 6, kind: input, shape index: {}]
  %s7 = inlined_call_operand.hbm [shape: f32[8,64], index: 7, kind: output, shape index: {}]
  %s8 = sld [smem:[#allocation0]]
  $region38: #{tpu_custom_call.1} parent=0
    _
  %s10 = ssub.s32 1, %s8
  %s11 = scalar_select 0, %s10, %s8
  $region1: #{tpu_custom_call.1} parent=0
    #allocation2 [shape = 'u8[4096]{0}', space=vmem, size = 0x1000, scoped, tag = 'output window, operand 0, single buffered']
    #allocation3 [shape = 's32[1]{0}', space=sflag, size = 0x4, scoped, tag = 'scoped memory for tpu_custom_call.1']
    %12 = vsyncpa [#allocation3], 0
    // Predicated region
    $region2: #{tpu_custom_call.1} parent=1 // pred_check
      _
    $region3: #{tpu_custom_call.1} parent=1 // pred_check_branch
      %14 = sbr.rel (0) target = $region5
    $region4: #{tpu_custom_call.1} parent=1 // pred_region
      _
    $region5: #{tpu_custom_call.1} parent=1 // pred_fallthru
      _
    // Predicated region
    $region6: #{tpu_custom_call.1} parent=1 // pred_check
      _
    $region7: #{tpu_custom_call.1} parent=1 // pred_check_branch
      %16 = sbr.rel (0) target = $region9
    $region8: #{tpu_custom_call.1} parent=1 // pred_region
      _
    $region9: #{tpu_custom_call.1} parent=1 // pred_fallthru
      _
    // Predicated region
    $region10: #{tpu_custom_call.1} parent=1 // pred_check
      _
    $region11: #{tpu_custom_call.1} parent=1 // pred_check_branch
      %18 = sbr.rel (0) target = $region13
    $region12: #{tpu_custom_call.1} parent=1 // pred_region
      _
    $region13: #{tpu_custom_call.1} parent=1 // pred_fallthru
      _
    // Predicated region
    $region14: #{tpu_custom_call.1} parent=1 // pred_check
      _
    $region15: #{tpu_custom_call.1} parent=1 // pred_check_branch
      %20 = sbr.rel (0) target = $region17
    $region16: #{tpu_custom_call.1} parent=1 // pred_region
      _
    $region17: #{tpu_custom_call.1} parent=1 // pred_fallthru
      _
    // Predicated region
    $region18: #{tpu_custom_call.1} parent=1 // pred_check
      _
    $region19: #{tpu_custom_call.1} parent=1 // pred_check_branch
      %22 = sbr.rel (0) target = $region21
    $region20: #{tpu_custom_call.1} parent=1 // pred_region
      _
    $region21: #{tpu_custom_call.1} parent=1 // pred_fallthru
      _
    // Predicated region
    $region22: #{tpu_custom_call.1} parent=1 // pred_check
      _
    $region23: #{tpu_custom_call.1} parent=1 // pred_check_branch
      %24 = sbr.rel (0) target = $region25
    $region24: #{tpu_custom_call.1} parent=1 // pred_region
      _
    $region25: #{tpu_custom_call.1} parent=1 // pred_fallthru
      _
    // Predicated region
    $region26: #{tpu_custom_call.1} parent=1 // pred_check
      _
    $region27: #{tpu_custom_call.1} parent=1 // pred_check_branch
      %26 = sbr.rel (0) target = $region29
    $region28: #{tpu_custom_call.1} parent=1 // pred_region
      _
    $region29: #{tpu_custom_call.1} parent=1 // pred_fallthru
      _
    %v27 = vld [vmem:[%s0] sm:$0xff]
    %v28 = vld [vmem:[%s1] sm:$0xff]
    %v29 = vld [vmem:[%s3] sm:$0xff]
    %v30 = vld [vmem:[%s3 + $0x8] sm:$0xff]
    %v31 = vld [vmem:[%s3 + $0x10] sm:$0xff]
    %v32 = vld [vmem:[%s3 + $0x18] sm:$0xff]
    %v33 = vld [vmem:[%s3 + $0x20] sm:$0xff]
    %v34 = vld [vmem:[%s3 + $0x28] sm:$0xff]
    %v35 = vld [vmem:[%s3 + $0x30] sm:$0xff]
    %v36 = vld [vmem:[%s3 + $0x38] sm:$0xff]
    %v37 = vld [vmem:[%s3 + $0x40] sm:$0xff]
    %v38 = vld [vmem:[%s3 + $0x48] sm:$0xff]
    %v39 = vld [vmem:[%s3 + $0x50] sm:$0xff]
    %v40 = vld [vmem:[%s3 + $0x58] sm:$0xff]
    %v41 = vld [vmem:[%s3 + $0x60] sm:$0xff]
    %v42 = vld [vmem:[%s3 + $0x68] sm:$0xff]
    %v43 = vld [vmem:[%s3 + $0x70] sm:$0xff]
    %v44 = vld [vmem:[%s3 + $0x78] sm:$0xff]
    %v45 = vld [vmem:[%s3 + $0x80] sm:$0xff]
    %v46 = vld [vmem:[%s3 + $0x88] sm:$0xff]
    %v47 = vld [vmem:[%s3 + $0x90] sm:$0xff]
    %v48 = vld [vmem:[%s3 + $0x98] sm:$0xff]
    %v49 = vld [vmem:[%s3 + $0xa0] sm:$0xff]
    %v50 = vld [vmem:[%s3 + $0xa8] sm:$0xff]
    %v51 = vld [vmem:[%s3 + $0xb0] sm:$0xff]
    %v52 = vld [vmem:[%s3 + $0xb8] sm:$0xff]
    %v53 = vld [vmem:[%s3 + $0xc0] sm:$0xff]
    %v54 = vld [vmem:[%s3 + $0xc8] sm:$0xff]
    %v55 = vld [vmem:[%s3 + $0xd0] sm:$0xff]
    %v56 = vld [vmem:[%s3 + $0xd8] sm:$0xff]
    %v57 = vld [vmem:[%s3 + $0xe0] sm:$0xff]
    %v58 = vld [vmem:[%s3 + $0xe8] sm:$0xff]
    %v59 = vld [vmem:[%s3 + $0xf0] sm:$0xff]
    %v60 = vld [vmem:[%s3 + $0xf8] sm:$0xff]
    %v61 = vld [vmem:[%s4] sm:$0xf]
    %v63 = vlaneseq
    %v64 = vshrl.u32 %v63, 7
    %v65 = vsub.s32 0, %v64
    %v66 = vrot.slane %v61, %v65
    %v67 = vlaneseq
    %v68 = vshrl.u32 %v67, 7
    %v69 = vsub.s32 1, %v68
    %v70 = vrot.slane %v61, %v69
    %v71 = vlaneseq
    %v72 = vshrl.u32 %v71, 7
    %v73 = vsub.s32 2, %v72
    %v74 = vrot.slane %v61, %v73
    %v75 = vlaneseq
    %v76 = vshrl.u32 %v75, 7
    %v77 = vsub.s32 3, %v76
    %v78 = vrot.slane %v61, %v77
    %vm83 = vcmask 523264
    %v85 = vsel %vm83, %v27, 0
    %87 = vmatprep.subr.mxu0 0.0
    %88 = vmatpush1.msra.mxu0 0.0
    %89 = vmatprep.subr.mxu0 0.0
    %90 = vmatpush1.msra.mxu0 0.0
    %91 = vmatprep.subr.mxu0 0.0
    %92 = vmatpush1.msra.mxu0 0.0
    %93 = vmatprep.subr.mxu0 0.0
    %94 = vmatpush1.msra.mxu0 0.0
    %95 = vmatprep.subr.mxu0 0.0
    %96 = vmatpush1.msra.mxu0 0.0
    %97 = vmatprep.subr.mxu0 0.0
    %98 = vmatpush1.msra.mxu0 0.0
    %99 = vmatprep.subr.mxu0 0.0
    %100 = vmatpush1.msra.mxu0 0.0
    %101 = vmatprep.subr.mxu0 0.0
    %102 = vmatpush1.msra.mxu0 0.0
    %103 = vmatprep.subr.mxu0 %v58
    %104 = vmatpush1.msra.mxu0 %v57
    %105 = vmatprep.subr.mxu0 %v54
    %106 = vmatpush1.msra.mxu0 %v53
    %107 = vmatprep.subr.mxu0 %v50
    %108 = vmatpush1.msra.mxu0 %v49
    %109 = vmatprep.subr.mxu0 %v46
    %110 = vmatpush1.msra.mxu0 %v45
    %111 = vmatprep.subr.mxu0 %v42
    %112 = vmatpush1.msra.mxu0 %v41
    %113 = vmatprep.subr.mxu0 %v38
    %114 = vmatpush1.msra.mxu0 %v37
    %115 = vmatprep.subr.mxu0 %v34
    %116 = vmatpush1.msra.mxu0 %v33
    %117 = vmatprep.subr.mxu0 %v30
    %118 = vmatpush1.msra.mxu0 %v29
    %119 = vmatprep.subr.mxu0 0.0
    %120 = vmatpush2.msra.mxu0 0.0
    %121 = vmatprep.subr.mxu0 0.0
    %122 = vmatpush2.msra.mxu0 0.0
    %123 = vmatprep.subr.mxu0 0.0
    %124 = vmatpush2.msra.mxu0 0.0
    %125 = vmatprep.subr.mxu0 0.0
    %126 = vmatpush2.msra.mxu0 0.0
    %127 = vmatprep.subr.mxu0 0.0
    %128 = vmatpush2.msra.mxu0 0.0
    %129 = vmatprep.subr.mxu0 0.0
    %130 = vmatpush2.msra.mxu0 0.0
    %131 = vmatprep.subr.mxu0 0.0
    %132 = vmatpush2.msra.mxu0 0.0
    %133 = vmatprep.subr.mxu0 0.0
    %134 = vmatpush2.msra.mxu0 0.0
    %135 = vmatprep.subr.mxu0 0.0
    %136 = vmatpush2.msra.mxu0 0.0
    %137 = vmatprep.subr.mxu0 0.0
    %138 = vmatpush2.msra.mxu0 0.0
    %139 = vmatprep.subr.mxu0 0.0
    %140 = vmatpush2.msra.mxu0 0.0
    %141 = vmatprep.subr.mxu0 0.0
    %142 = vmatpush2.msra.mxu0 0.0
    %143 = vmatprep.subr.mxu0 0.0
    %144 = vmatpush2.msra.mxu0 0.0
    %145 = vmatprep.subr.mxu0 0.0
    %146 = vmatpush2.msra.mxu0 0.0
    %147 = vmatprep.subr.mxu0 0.0
    %148 = vmatpush2.msra.mxu0 0.0
    %149 = vmatprep.subr.mxu0 0.0
    %150 = vmatpush2.msra.mxu0 0.0
    %151 = vmatprep.mubr.f32.mxu0 0.0
    %152 = vmatmul.mubr.f32.gmra.mxu0 %v85
    %v153 = vpop.f32.mrf.mxu0
    %v154 = vadd.f32 %v66, %v153
    %v155 = vpop.f32.mrf.mxu0
    %v156 = vadd.f32 %v70, %v155
    %157 = vdwg.mxu0
    %158 = vmatprep.subr.mxu0 0.0
    %159 = vmatpush1.msra.mxu0 0.0
    %160 = vmatprep.subr.mxu0 0.0
    %161 = vmatpush1.msra.mxu0 0.0
    %162 = vmatprep.subr.mxu0 0.0
    %163 = vmatpush1.msra.mxu0 0.0
    %164 = vmatprep.subr.mxu0 0.0
    %165 = vmatpush1.msra.mxu0 0.0
    %166 = vmatprep.subr.mxu0 0.0
    %167 = vmatpush1.msra.mxu0 0.0
    %168 = vmatprep.subr.mxu0 0.0
    %169 = vmatpush1.msra.mxu0 0.0
    %170 = vmatprep.subr.mxu0 0.0
    %171 = vmatpush1.msra.mxu0 0.0
    %172 = vmatprep.subr.mxu0 0.0
    %173 = vmatpush1.msra.mxu0 0.0
    %174 = vmatprep.subr.mxu0 %v60
    %175 = vmatpush1.msra.mxu0 %v59
    %176 = vmatprep.subr.mxu0 %v56
    %177 = vmatpush1.msra.mxu0 %v55
    %178 = vmatprep.subr.mxu0 %v52
    %179 = vmatpush1.msra.mxu0 %v51
    %180 = vmatprep.subr.mxu0 %v48
    %181 = vmatpush1.msra.mxu0 %v47
    %182 = vmatprep.subr.mxu0 %v44
    %183 = vmatpush1.msra.mxu0 %v43
    %184 = vmatprep.subr.mxu0 %v40
    %185 = vmatpush1.msra.mxu0 %v39
    %186 = vmatprep.subr.mxu0 %v36
    %187 = vmatpush1.msra.mxu0 %v35
    %188 = vmatprep.subr.mxu0 %v32
    %189 = vmatpush1.msra.mxu0 %v31
    %190 = vmatprep.subr.mxu0 0.0
    %191 = vmatpush2.msra.mxu0 0.0
    %192 = vmatprep.subr.mxu0 0.0
    %193 = vmatpush2.msra.mxu0 0.0
    %194 = vmatprep.subr.mxu0 0.0
    %195 = vmatpush2.msra.mxu0 0.0
    %196 = vmatprep.subr.mxu0 0.0
    %197 = vmatpush2.msra.mxu0 0.0
    %198 = vmatprep.subr.mxu0 0.0
    %199 = vmatpush2.msra.mxu0 0.0
    %200 = vmatprep.subr.mxu0 0.0
    %201 = vmatpush2.msra.mxu0 0.0
    %202 = vmatprep.subr.mxu0 0.0
    %203 = vmatpush2.msra.mxu0 0.0
    %204 = vmatprep.subr.mxu0 0.0
    %205 = vmatpush2.msra.mxu0 0.0
    %206 = vmatprep.subr.mxu0 0.0
    %207 = vmatpush2.msra.mxu0 0.0
    %208 = vmatprep.subr.mxu0 0.0
    %209 = vmatpush2.msra.mxu0 0.0
    %210 = vmatprep.subr.mxu0 0.0
    %211 = vmatpush2.msra.mxu0 0.0
    %212 = vmatprep.subr.mxu0 0.0
    %213 = vmatpush2.msra.mxu0 0.0
    %214 = vmatprep.subr.mxu0 0.0
    %215 = vmatpush2.msra.mxu0 0.0
    %216 = vmatprep.subr.mxu0 0.0
    %217 = vmatpush2.msra.mxu0 0.0
    %218 = vmatprep.subr.mxu0 0.0
    %219 = vmatpush2.msra.mxu0 0.0
    %220 = vmatprep.subr.mxu0 0.0
    %221 = vmatpush2.msra.mxu0 0.0
    %222 = vmatprep.mubr.f32.mxu0 0.0
    %223 = vmatmul.mubr.f32.gmra.mxu0 %v85
    %v224 = vpop.f32.mrf.mxu0
    %v225 = vadd.f32 %v74, %v224
    %v226 = vpop.f32.mrf.mxu0
    %v227 = vadd.f32 %v78, %v226
    %228 = vdwg.mxu0
    %v229 = vmax.f32 %v154, 0.0
    %v230 = vmax.f32 %v156, 0.0
    %v231 = vmax.f32 %v225, 0.0
    %v232 = vmax.f32 %v227, 0.0
    %v233 = vld [vmem:[%s2] sm:$0xff]
    %v234 = vld [vmem:[%s2 + $0x8] sm:$0xff]
    %v235 = vld [vmem:[%s2 + $0x10] sm:$0xff]
    %v236 = vld [vmem:[%s2 + $0x18] sm:$0xff]
    %vm237 = vcmask 64512
    %v239 = vsel %vm237, %v28, 0
    %241 = vmatprep.subr.mxu0 0.0
    %242 = vmatpush1.msra.mxu0 0.0
    %243 = vmatprep.subr.mxu0 0.0
    %244 = vmatpush1.msra.mxu0 0.0
    %245 = vmatprep.subr.mxu0 0.0
    %246 = vmatpush1.msra.mxu0 0.0
    %247 = vmatprep.subr.mxu0 0.0
    %248 = vmatpush1.msra.mxu0 0.0
    %249 = vmatprep.subr.mxu0 0.0
    %250 = vmatpush1.msra.mxu0 0.0
    %251 = vmatprep.subr.mxu0 0.0
    %252 = vmatpush1.msra.mxu0 0.0
    %253 = vmatprep.subr.mxu0 0.0
    %254 = vmatpush1.msra.mxu0 0.0
    %255 = vmatprep.subr.mxu0 0.0
    %256 = vmatpush1.msra.mxu0 0.0
    %257 = vmatprep.subr.mxu0 0.0
    %258 = vmatpush1.msra.mxu0 0.0
    %259 = vmatprep.subr.mxu0 0.0
    %260 = vmatpush1.msra.mxu0 0.0
    %261 = vmatprep.subr.mxu0 0.0
    %262 = vmatpush1.msra.mxu0 0.0
    %263 = vmatprep.subr.mxu0 0.0
    %264 = vmatpush1.msra.mxu0 0.0
    %265 = vmatprep.subr.mxu0 0.0
    %266 = vmatpush1.msra.mxu0 0.0
    %267 = vmatprep.subr.mxu0 0.0
    %268 = vmatpush1.msra.mxu0 0.0
    %269 = vmatprep.subr.mxu0 0.0
    %270 = vmatpush1.msra.mxu0 0.0
    %271 = vmatprep.subr.mxu0 %v234
    %272 = vmatpush1.msra.mxu0 %v233
    %273 = vmatprep.subr.mxu0 0.0
    %274 = vmatpush2.msra.mxu0 0.0
    %275 = vmatprep.subr.mxu0 0.0
    %276 = vmatpush2.msra.mxu0 0.0
    %277 = vmatprep.subr.mxu0 0.0
    %278 = vmatpush2.msra.mxu0 0.0
    %279 = vmatprep.subr.mxu0 0.0
    %280 = vmatpush2.msra.mxu0 0.0
    %281 = vmatprep.subr.mxu0 0.0
    %282 = vmatpush2.msra.mxu0 0.0
    %283 = vmatprep.subr.mxu0 0.0
    %284 = vmatpush2.msra.mxu0 0.0
    %285 = vmatprep.subr.mxu0 0.0
    %286 = vmatpush2.msra.mxu0 0.0
    %287 = vmatprep.subr.mxu0 0.0
    %288 = vmatpush2.msra.mxu0 0.0
    %289 = vmatprep.subr.mxu0 0.0
    %290 = vmatpush2.msra.mxu0 0.0
    %291 = vmatprep.subr.mxu0 0.0
    %292 = vmatpush2.msra.mxu0 0.0
    %293 = vmatprep.subr.mxu0 0.0
    %294 = vmatpush2.msra.mxu0 0.0
    %295 = vmatprep.subr.mxu0 0.0
    %296 = vmatpush2.msra.mxu0 0.0
    %297 = vmatprep.subr.mxu0 0.0
    %298 = vmatpush2.msra.mxu0 0.0
    %299 = vmatprep.subr.mxu0 0.0
    %300 = vmatpush2.msra.mxu0 0.0
    %301 = vmatprep.subr.mxu0 0.0
    %302 = vmatpush2.msra.mxu0 0.0
    %303 = vmatprep.subr.mxu0 0.0
    %304 = vmatpush2.msra.mxu0 0.0
    %305 = vmatprep.mubr.f32.mxu0 0.0
    %306 = vmatmul.mubr.f32.gmra.mxu0 %v239
    %v307 = vpop.f32.mrf.mxu0
    %v308 = vadd.f32 0.0, %v307
    %v309 = vpop.f32.mrf.mxu0
    %v310 = vadd.f32 0.0, %v309
    %311 = vdwg.mxu0
    %312 = vmatprep.subr.mxu0 0.0
    %313 = vmatpush1.msra.mxu0 0.0
    %314 = vmatprep.subr.mxu0 0.0
    %315 = vmatpush1.msra.mxu0 0.0
    %316 = vmatprep.subr.mxu0 0.0
    %317 = vmatpush1.msra.mxu0 0.0
    %318 = vmatprep.subr.mxu0 0.0
    %319 = vmatpush1.msra.mxu0 0.0
    %320 = vmatprep.subr.mxu0 0.0
    %321 = vmatpush1.msra.mxu0 0.0
    %322 = vmatprep.subr.mxu0 0.0
    %323 = vmatpush1.msra.mxu0 0.0
    %324 = vmatprep.subr.mxu0 0.0
    %325 = vmatpush1.msra.mxu0 0.0
    %326 = vmatprep.subr.mxu0 0.0
    %327 = vmatpush1.msra.mxu0 0.0
    %328 = vmatprep.subr.mxu0 0.0
    %329 = vmatpush1.msra.mxu0 0.0
    %330 = vmatprep.subr.mxu0 0.0
    %331 = vmatpush1.msra.mxu0 0.0
    %332 = vmatprep.subr.mxu0 0.0
    %333 = vmatpush1.msra.mxu0 0.0
    %334 = vmatprep.subr.mxu0 0.0
    %335 = vmatpush1.msra.mxu0 0.0
    %336 = vmatprep.subr.mxu0 0.0
    %337 = vmatpush1.msra.mxu0 0.0
    %338 = vmatprep.subr.mxu0 0.0
    %339 = vmatpush1.msra.mxu0 0.0
    %340 = vmatprep.subr.mxu0 0.0
    %341 = vmatpush1.msra.mxu0 0.0
    %342 = vmatprep.subr.mxu0 %v236
    %343 = vmatpush1.msra.mxu0 %v235
    %344 = vmatprep.subr.mxu0 0.0
    %345 = vmatpush2.msra.mxu0 0.0
    %346 = vmatprep.subr.mxu0 0.0
    %347 = vmatpush2.msra.mxu0 0.0
    %348 = vmatprep.subr.mxu0 0.0
    %349 = vmatpush2.msra.mxu0 0.0
    %350 = vmatprep.subr.mxu0 0.0
    %351 = vmatpush2.msra.mxu0 0.0
    %352 = vmatprep.subr.mxu0 0.0
    %353 = vmatpush2.msra.mxu0 0.0
    %354 = vmatprep.subr.mxu0 0.0
    %355 = vmatpush2.msra.mxu0 0.0
    %356 = vmatprep.subr.mxu0 0.0
    %357 = vmatpush2.msra.mxu0 0.0
    %358 = vmatprep.subr.mxu0 0.0
    %359 = vmatpush2.msra.mxu0 0.0
    %360 = vmatprep.subr.mxu0 0.0
    %361 = vmatpush2.msra.mxu0 0.0
    %362 = vmatprep.subr.mxu0 0.0
    %363 = vmatpush2.msra.mxu0 0.0
    %364 = vmatprep.subr.mxu0 0.0
    %365 = vmatpush2.msra.mxu0 0.0
    %366 = vmatprep.subr.mxu0 0.0
    %367 = vmatpush2.msra.mxu0 0.0
    %368 = vmatprep.subr.mxu0 0.0
    %369 = vmatpush2.msra.mxu0 0.0
    %370 = vmatprep.subr.mxu0 0.0
    %371 = vmatpush2.msra.mxu0 0.0
    %372 = vmatprep.subr.mxu0 0.0
    %373 = vmatpush2.msra.mxu0 0.0
    %374 = vmatprep.subr.mxu0 0.0
    %375 = vmatpush2.msra.mxu0 0.0
    %376 = vmatprep.mubr.f32.mxu0 0.0
    %377 = vmatmul.mubr.f32.gmra.mxu0 %v239
    %v378 = vpop.f32.mrf.mxu0
    %v379 = vadd.f32 0.0, %v378
    %v380 = vpop.f32.mrf.mxu0
    %v381 = vadd.f32 0.0, %v380
    %382 = vdwg.mxu0
    %v383 = vsel %vm237, %v28, 0.0
    %384 = vadd.xlane.f32.xlu0 %v383
    %v385 = vpop.xlane.xlu0 %384
    %v386 = vmul.f32 %v229, %v308
    %v387 = vmul.f32 %v230, %v310
    %v388 = vmul.f32 %v231, %v379
    %v389 = vmul.f32 %v232, %v381
    %v390 = vld [vmem:[%s5] sm:$0xff]
    %v391 = vld [vmem:[%s5 + $0x8] sm:$0xff]
    %v392 = vld [vmem:[%s5 + $0x10] sm:$0xff]
    %v393 = vld [vmem:[%s5 + $0x18] sm:$0xff]
    %v394 = vld [vmem:[%s5 + $0x20] sm:$0xff]
    %v395 = vld [vmem:[%s5 + $0x28] sm:$0xff]
    %v396 = vld [vmem:[%s5 + $0x30] sm:$0xff]
    %v397 = vld [vmem:[%s5 + $0x38] sm:$0xff]
    %v398 = vld [vmem:[%s5 + $0x40] sm:$0xff]
    %v399 = vld [vmem:[%s5 + $0x48] sm:$0xff]
    %v400 = vld [vmem:[%s5 + $0x50] sm:$0xff]
    %v401 = vld [vmem:[%s5 + $0x58] sm:$0xff]
    %v402 = vld [vmem:[%s5 + $0x60] sm:$0xff]
    %v403 = vld [vmem:[%s5 + $0x68] sm:$0xff]
    %v404 = vld [vmem:[%s5 + $0x70] sm:$0xff]
    %v405 = vld [vmem:[%s5 + $0x78] sm:$0xff]
    %v406 = vld [vmem:[%s5 + $0x80] sm:$0xff]
    %v407 = vld [vmem:[%s5 + $0x88] sm:$0xff]
    %v408 = vld [vmem:[%s5 + $0x90] sm:$0xff]
    %v409 = vld [vmem:[%s5 + $0x98] sm:$0xff]
    %v410 = vld [vmem:[%s5 + $0xa0] sm:$0xff]
    %v411 = vld [vmem:[%s5 + $0xa8] sm:$0xff]
    %v412 = vld [vmem:[%s5 + $0xb0] sm:$0xff]
    %v413 = vld [vmem:[%s5 + $0xb8] sm:$0xff]
    %v414 = vld [vmem:[%s5 + $0xc0] sm:$0xff]
    %v415 = vld [vmem:[%s5 + $0xc8] sm:$0xff]
    %v416 = vld [vmem:[%s5 + $0xd0] sm:$0xff]
    %v417 = vld [vmem:[%s5 + $0xd8] sm:$0xff]
    %v418 = vld [vmem:[%s5 + $0xe0] sm:$0xff]
    %v419 = vld [vmem:[%s5 + $0xe8] sm:$0xff]
    %v420 = vld [vmem:[%s5 + $0xf0] sm:$0xff]
    %v421 = vld [vmem:[%s5 + $0xf8] sm:$0xff]
    %v422 = vld [vmem:[%s5 + $0x100] sm:$0xff]
    %v423 = vld [vmem:[%s5 + $0x108] sm:$0xff]
    %v424 = vld [vmem:[%s5 + $0x110] sm:$0xff]
    %v425 = vld [vmem:[%s5 + $0x118] sm:$0xff]
    %v426 = vld [vmem:[%s5 + $0x120] sm:$0xff]
    %v427 = vld [vmem:[%s5 + $0x128] sm:$0xff]
    %v428 = vld [vmem:[%s5 + $0x130] sm:$0xff]
    %v429 = vld [vmem:[%s5 + $0x138] sm:$0xff]
    %v430 = vld [vmem:[%s5 + $0x140] sm:$0xff]
    %v431 = vld [vmem:[%s5 + $0x148] sm:$0xff]
    %v432 = vld [vmem:[%s5 + $0x150] sm:$0xff]
    %v433 = vld [vmem:[%s5 + $0x158] sm:$0xff]
    %v434 = vld [vmem:[%s5 + $0x160] sm:$0xff]
    %v435 = vld [vmem:[%s5 + $0x168] sm:$0xff]
    %v436 = vld [vmem:[%s5 + $0x170] sm:$0xff]
    %v437 = vld [vmem:[%s5 + $0x178] sm:$0xff]
    %v438 = vld [vmem:[%s5 + $0x180] sm:$0xff]
    %v439 = vld [vmem:[%s5 + $0x188] sm:$0xff]
    %v440 = vld [vmem:[%s5 + $0x190] sm:$0xff]
    %v441 = vld [vmem:[%s5 + $0x198] sm:$0xff]
    %v442 = vld [vmem:[%s5 + $0x1a0] sm:$0xff]
    %v443 = vld [vmem:[%s5 + $0x1a8] sm:$0xff]
    %v444 = vld [vmem:[%s5 + $0x1b0] sm:$0xff]
    %v445 = vld [vmem:[%s5 + $0x1b8] sm:$0xff]
    %v446 = vld [vmem:[%s5 + $0x1c0] sm:$0xff]
    %v447 = vld [vmem:[%s5 + $0x1c8] sm:$0xff]
    %v448 = vld [vmem:[%s5 + $0x1d0] sm:$0xff]
    %v449 = vld [vmem:[%s5 + $0x1d8] sm:$0xff]
    %v450 = vld [vmem:[%s5 + $0x1e0] sm:$0xff]
    %v451 = vld [vmem:[%s5 + $0x1e8] sm:$0xff]
    %v452 = vld [vmem:[%s5 + $0x1f0] sm:$0xff]
    %v453 = vld [vmem:[%s5 + $0x1f8] sm:$0xff]
    %v454 = vld [vmem:[%s6] sm:$0x1]
    %v456 = vlaneseq
    %v457 = vshrl.u32 %v456, 7
    %v458 = vsub.s32 0, %v457
    %v459 = vrot.slane %v454, %v458
    %v461 = vmul.f32 %v385, %v459
    %462 = vmatprep.subr.mxu0 0.0
    %463 = vmatpush1.msra.mxu0 %v405
    %464 = vmatprep.subr.mxu0 0.0
    %465 = vmatpush1.msra.mxu0 %v404
    %466 = vmatprep.subr.mxu0 0.0
    %467 = vmatpush1.msra.mxu0 %v403
    %468 = vmatprep.subr.mxu0 0.0
    %469 = vmatpush1.msra.mxu0 %v402
    %470 = vmatprep.subr.mxu0 0.0
    %471 = vmatpush1.msra.mxu0 %v401
    %472 = vmatprep.subr.mxu0 0.0
    %473 = vmatpush1.msra.mxu0 %v400
    %474 = vmatprep.subr.mxu0 0.0
    %475 = vmatpush1.msra.mxu0 %v399
    %476 = vmatprep.subr.mxu0 0.0
    %477 = vmatpush1.msra.mxu0 %v398
    %478 = vmatprep.subr.mxu0 0.0
    %479 = vmatpush1.msra.mxu0 %v397
    %480 = vmatprep.subr.mxu0 0.0
    %481 = vmatpush1.msra.mxu0 %v396
    %482 = vmatprep.subr.mxu0 0.0
    %483 = vmatpush1.msra.mxu0 %v395
    %484 = vmatprep.subr.mxu0 0.0
    %485 = vmatpush1.msra.mxu0 %v394
    %486 = vmatprep.subr.mxu0 0.0
    %487 = vmatpush1.msra.mxu0 %v393
    %488 = vmatprep.subr.mxu0 0.0
    %489 = vmatpush1.msra.mxu0 %v392
    %490 = vmatprep.subr.mxu0 0.0
    %491 = vmatpush1.msra.mxu0 %v391
    %492 = vmatprep.subr.mxu0 0.0
    %493 = vmatpush1.msra.mxu0 %v390
    %494 = vmatprep.subr.mxu0 0.0
    %495 = vmatpush2.msra.mxu0 %v421
    %496 = vmatprep.subr.mxu0 0.0
    %497 = vmatpush2.msra.mxu0 %v420
    %498 = vmatprep.subr.mxu0 0.0
    %499 = vmatpush2.msra.mxu0 %v419
    %500 = vmatprep.subr.mxu0 0.0
    %501 = vmatpush2.msra.mxu0 %v418
    %502 = vmatprep.subr.mxu0 0.0
    %503 = vmatpush2.msra.mxu0 %v417
    %504 = vmatprep.subr.mxu0 0.0
    %505 = vmatpush2.msra.mxu0 %v416
    %506 = vmatprep.subr.mxu0 0.0
    %507 = vmatpush2.msra.mxu0 %v415
    %508 = vmatprep.subr.mxu0 0.0
    %509 = vmatpush2.msra.mxu0 %v414
    %510 = vmatprep.subr.mxu0 0.0
    %511 = vmatpush2.msra.mxu0 %v413
    %512 = vmatprep.subr.mxu0 0.0
    %513 = vmatpush2.msra.mxu0 %v412
    %514 = vmatprep.subr.mxu0 0.0
    %515 = vmatpush2.msra.mxu0 %v411
    %516 = vmatprep.subr.mxu0 0.0
    %517 = vmatpush2.msra.mxu0 %v410
    %518 = vmatprep.subr.mxu0 0.0
    %519 = vmatpush2.msra.mxu0 %v409
    %520 = vmatprep.subr.mxu0 0.0
    %521 = vmatpush2.msra.mxu0 %v408
    %522 = vmatprep.subr.mxu0 0.0
    %523 = vmatpush2.msra.mxu0 %v407
    %524 = vmatprep.subr.mxu0 0.0
    %525 = vmatpush2.msra.mxu0 %v406
    %526 = vmatprep.mubr.f32.mxu0 %v387
    %527 = vmatmul.mubr.f32.gmra.mxu0 %v386
    %v528 = vpop.f32.mrf.mxu0
    %v529 = vadd.f32 %v461, %v528
    %v530 = vpop.f32.mrf.mxu0
    %531 = vdwg.mxu0
    %532 = vmatprep.subr.mxu0 0.0
    %533 = vmatpush1.msra.mxu0 %v437
    %534 = vmatprep.subr.mxu0 0.0
    %535 = vmatpush1.msra.mxu0 %v436
    %536 = vmatprep.subr.mxu0 0.0
    %537 = vmatpush1.msra.mxu0 %v435
    %538 = vmatprep.subr.mxu0 0.0
    %539 = vmatpush1.msra.mxu0 %v434
    %540 = vmatprep.subr.mxu0 0.0
    %541 = vmatpush1.msra.mxu0 %v433
    %542 = vmatprep.subr.mxu0 0.0
    %543 = vmatpush1.msra.mxu0 %v432
    %544 = vmatprep.subr.mxu0 0.0
    %545 = vmatpush1.msra.mxu0 %v431
    %546 = vmatprep.subr.mxu0 0.0
    %547 = vmatpush1.msra.mxu0 %v430
    %548 = vmatprep.subr.mxu0 0.0
    %549 = vmatpush1.msra.mxu0 %v429
    %550 = vmatprep.subr.mxu0 0.0
    %551 = vmatpush1.msra.mxu0 %v428
    %552 = vmatprep.subr.mxu0 0.0
    %553 = vmatpush1.msra.mxu0 %v427
    %554 = vmatprep.subr.mxu0 0.0
    %555 = vmatpush1.msra.mxu0 %v426
    %556 = vmatprep.subr.mxu0 0.0
    %557 = vmatpush1.msra.mxu0 %v425
    %558 = vmatprep.subr.mxu0 0.0
    %559 = vmatpush1.msra.mxu0 %v424
    %560 = vmatprep.subr.mxu0 0.0
    %561 = vmatpush1.msra.mxu0 %v423
    %562 = vmatprep.subr.mxu0 0.0
    %563 = vmatpush1.msra.mxu0 %v422
    %564 = vmatprep.subr.mxu0 0.0
    %565 = vmatpush2.msra.mxu0 %v453
    %566 = vmatprep.subr.mxu0 0.0
    %567 = vmatpush2.msra.mxu0 %v452
    %568 = vmatprep.subr.mxu0 0.0
    %569 = vmatpush2.msra.mxu0 %v451
    %570 = vmatprep.subr.mxu0 0.0
    %571 = vmatpush2.msra.mxu0 %v450
    %572 = vmatprep.subr.mxu0 0.0
    %573 = vmatpush2.msra.mxu0 %v449
    %574 = vmatprep.subr.mxu0 0.0
    %575 = vmatpush2.msra.mxu0 %v448
    %576 = vmatprep.subr.mxu0 0.0
    %577 = vmatpush2.msra.mxu0 %v447
    %578 = vmatprep.subr.mxu0 0.0
    %579 = vmatpush2.msra.mxu0 %v446
    %580 = vmatprep.subr.mxu0 0.0
    %581 = vmatpush2.msra.mxu0 %v445
    %582 = vmatprep.subr.mxu0 0.0
    %583 = vmatpush2.msra.mxu0 %v444
    %584 = vmatprep.subr.mxu0 0.0
    %585 = vmatpush2.msra.mxu0 %v443
    %586 = vmatprep.subr.mxu0 0.0
    %587 = vmatpush2.msra.mxu0 %v442
    %588 = vmatprep.subr.mxu0 0.0
    %589 = vmatpush2.msra.mxu0 %v441
    %590 = vmatprep.subr.mxu0 0.0
    %591 = vmatpush2.msra.mxu0 %v440
    %592 = vmatprep.subr.mxu0 0.0
    %593 = vmatpush2.msra.mxu0 %v439
    %594 = vmatprep.subr.mxu0 0.0
    %595 = vmatpush2.msra.mxu0 %v438
    %596 = vmatprep.mubr.f32.mxu0 %v389
    %597 = vmatmul.mubr.f32.gmra.mxu0 %v388
    %v598 = vpop.f32.mrf.mxu0
    %v599 = vadd.f32 %v529, %v598
    %v600 = vpop.f32.mrf.mxu0
    %601 = vdwg.mxu0
    %v602 = vadd.f32 %v385, 1e-08
    %v603 = vrcp.pop %v602
    %v604 = vmul.f32 %v599, %v603
    %605 = vst.msk [vmem:[#allocation2] sm:$0xff] %vm83, %v604
    // Predicated region
    $region30: #{tpu_custom_call.1} parent=1 // pred_check
      _
    $region31: #{tpu_custom_call.1} parent=1 // pred_check_branch
      %607 = sbr.rel (0) target = $region33
    $region32: #{tpu_custom_call.1} parent=1 // pred_region
      %s609 = ssub.s32 128, 128
      %610 = vsyncadd [#allocation3], %s609
      %s612 = sshll.u32 [#allocation2], 4
      %s613 = int_to_ptr.vmem [resolvable:$true] %s612
      %615 = dma.vmem_to_hbm [thread:$0]  %s613, 128, %s7, [#allocation3]
    $region33: #{tpu_custom_call.1} parent=1 // pred_fallthru
      _
    // Predicated region
    $region34: #{tpu_custom_call.1} parent=1 // pred_check
      _
    $region35: #{tpu_custom_call.1} parent=1 // pred_check_branch
      %617 = sbr.rel (0) target = $region37
    $region36: #{tpu_custom_call.1} parent=1 // pred_region
      %618 = dma.done [#allocation3], 128
    $region37: #{tpu_custom_call.1} parent=1 // pred_fallthru
      _
    %619 = vsyncpa [#allocation3], 1

</llo_original>
